<compile_context>
chip_gen: v6e
topology: v6e:2x2x1
jax: 0.10.0
libtpu: 0.0.40
codegen_flags: <defaults>
</compile_context>

<pallas_src>
import functools

import jax
import jax.numpy as jnp
from jax.experimental import pallas as pl
from jax.experimental.pallas import tpu as pltpu

_LANES = 128


def _silu_kernel(x_ref, o_ref, *, compute_dtype):
    # SiLU(x) = x * sigmoid(x) = 0.5*x*(1 + tanh(0.5*x)):
    # exactly one EUP transcendental (tanh) per element instead of exp+divide.
    x = x_ref[...].astype(compute_dtype)
    half = jnp.asarray(0.5, compute_dtype)
    one = jnp.asarray(1.0, compute_dtype)
    hx = half * x
    o_ref[...] = (hx * (one + jnp.tanh(hx))).astype(o_ref.dtype)


def _round_up(v, m):
    return -(-v // m) * m


def _chip_flags():
    """Returns (is_v7x, has_bf16_vpu_eup) for the attached TPU generation."""
    try:
        kind = jax.devices()[0].device_kind.lower()
    except Exception:
        kind = ""
    is_v7 = "v7" in kind
    has_bf16 = ("v6" in kind) or is_v7
    return is_v7, has_bf16


def silu(x):
    """Applies SiLU(x) = x * sigmoid(x) elementwise, any shape."""
    orig_shape = x.shape
    orig_dtype = x.dtype
    n = x.size
    if n == 0:
        return x

    is_v7, has_bf16 = _chip_flags()
    itemsize = jnp.dtype(orig_dtype).itemsize

    # Compute dtype: native bf16 on v6e/v7x (2x EUP/VPU rate, half the vreg
    # traffic); otherwise upcast to f32 (v5e has no bf16 VPU/EUP).
    if orig_dtype == jnp.bfloat16 and has_bf16:
        compute_dtype = jnp.bfloat16
    else:
        compute_dtype = jnp.float32

    # Packed-dtype sublane multiple: 8 (32-bit), 16 (16-bit), 32 (8-bit).
    sublane_mult = max(8, 32 // itemsize)

    # Per-pipeline-buffer budget: ~4 MiB on v7x (64 MiB physical VMEM),
    # ~8 MiB on v5e/v6e (128 MiB). With double-buffered in+out that is
    # 16 MiB / 32 MiB, under the scoped limit requested below.
    block_bytes = (4 if is_v7 else 8) * 1024 * 1024
    vmem_limit = (32 if is_v7 else 64) * 1024 * 1024
    max_block_rows = max(sublane_mult, block_bytes // (_LANES * itemsize))
    max_block_rows = (max_block_rows // sublane_mult) * sublane_mult

    # Flatten to a lane-dense (rows, 128) slab. Pad only to a 128-lane
    # multiple when needed; ragged row counts are handled by the grid's
    # partial last block, so no full-tile pad / slice copies on typical
    # activation shapes.
    pad = (-n) % _LANES
    x_flat = jnp.ravel(x)
    if pad:
        x_flat = jnp.pad(x_flat, (0, pad))  # SiLU(0) == 0; sliced off below
    n_rows = (n + pad) // _LANES
    x2d = x_flat.reshape(n_rows, _LANES)

    if is_v7 and n_rows > sublane_mult:
        # Megacore: aim for an even number of grid steps so both
        # TensorCores get equal work.
        block_rows = min(max_block_rows,
                         _round_up(pl.cdiv(n_rows, 2), sublane_mult))
        grid_len = pl.cdiv(n_rows, block_rows)
        if grid_len > 2 and grid_len % 2:
            alt_rows = _round_up(pl.cdiv(n_rows, grid_len + 1), sublane_mult)
            alt_grid = pl.cdiv(n_rows, alt_rows)
            if alt_grid % 2 == 0:
                block_rows, grid_len = alt_rows, alt_grid
    else:
        # Single-TC chips (and tiny inputs): one maximal block when it fits,
        # no forced split (avoids an extra ~0.35 us grid step).
        block_rows = n_rows if n_rows <= max_block_rows else max_block_rows
        grid_len = pl.cdiv(n_rows, block_rows)

    kernel = functools.partial(_silu_kernel, compute_dtype=compute_dtype)

    out2d = pl.pallas_call(
        kernel,
        out_shape=jax.ShapeDtypeStruct((n_rows, _LANES), orig_dtype),
        grid_spec=pltpu.PrefetchScalarGridSpec(
            num_scalar_prefetch=0,
            grid=(grid_len,),
            in_specs=[pl.BlockSpec((block_rows, _LANES), lambda i: (i, 0))],
            out_specs=pl.BlockSpec((block_rows, _LANES), lambda i: (i, 0)),
        ),
        compiler_params=pltpu.CompilerParams(
            dimension_semantics=("parallel",),
            vmem_limit_bytes=vmem_limit,
        ),
        cost_estimate=pl.CostEstimate(
            flops=5 * n,
            transcendentals=n,
            bytes_accessed=2 * n * itemsize,
        ),
    )(x2d)

    if pad:
        return out2d.reshape(-1)[:n].reshape(orig_shape)
    return out2d.reshape(orig_shape)


if __name__ == "__main__":
    key = jax.random.PRNGKey(0)

    # Shape consistent with the module contract: (N, *) — NCHW-like dims.
    x = jax.random.normal(key, (2, 4, 16, 16), dtype=jnp.float32)
    out = silu(x)
    jax.block_until_ready(out)
    ref = x * jax.nn.sigmoid(x)
    assert out.shape == x.shape and out.dtype == x.dtype
    assert jnp.allclose(out, ref, atol=1e-5, rtol=1e-5)

    # Ragged size (not a multiple of 128) exercises the minimal-pad fallback.
    x2 = jax.random.normal(jax.random.PRNGKey(1), (2, 7, 9), dtype=jnp.float32)
    out2 = silu(x2)
    jax.block_until_ready(out2)
    ref2 = x2 * jax.nn.sigmoid(x2)
    assert out2.shape == x2.shape and out2.dtype == x2.dtype
    assert jnp.allclose(out2, ref2, atol=1e-5, rtol=1e-5)

    # bf16 path (native bf16 compute on v6e/v7x, f32 upcast elsewhere).
    x3 = jax.random.normal(jax.random.PRNGKey(2), (2, 8, 32)).astype(jnp.bfloat16)
    out3 = silu(x3)
    jax.block_until_ready(out3)
    x3_f32 = x3.astype(jnp.float32)
    ref3 = x3_f32 * jax.nn.sigmoid(x3_f32)
    assert out3.shape == x3.shape and out3.dtype == x3.dtype
    assert jnp.allclose(out3.astype(jnp.float32), ref3, atol=5e-2, rtol=5e-2)

    print("KERNEL_OK")
</pallas_src>

<mosaic_0001>
module attributes {stable_mosaic.version = 11 : i64} {
  func.func @_silu_kernel(%arg0: i32, %arg1: memref<16x128xf32, #tpu.memory_space<vmem>>, %arg2: memref<16x128xf32, #tpu.memory_space<vmem>>) attributes {dimension_semantics = [#tpu.dimension_semantics<parallel>], iteration_bounds = array<i64: 1>, scalar_prefetch = 0 : i64, scratch_operands = 0 : i64, tpu.core_type = #tpu.core_type<tc>, window_params = [{transform_indices = @transform_0, window_bounds = array<i64: 16, 128>}, {transform_indices = @transform_1, window_bounds = array<i64: 16, 128>}]} {
    %c0 = arith.constant 0 : index
    %c0_0 = arith.constant 0 : index
    %0 = vector.load %arg1[%c0, %c0_0] : memref<16x128xf32, #tpu.memory_space<vmem>>, vector<16x128xf32>
    %cst = arith.constant 5.000000e-01 : f32
    %1 = vector.broadcast %cst : f32 to vector<16x128xf32>
    %2 = arith.mulf %1, %0 : vector<16x128xf32>
    %3 = math.tanh %2 : vector<16x128xf32>
    %cst_1 = arith.constant 1.000000e+00 : f32
    %4 = vector.broadcast %cst_1 : f32 to vector<16x128xf32>
    %5 = arith.addf %4, %3 : vector<16x128xf32>
    %6 = arith.mulf %2, %5 : vector<16x128xf32>
    %c0_2 = arith.constant 0 : index
    %c0_3 = arith.constant 0 : index
    %7 = vector.load %arg2[%c0_2, %c0_3] : memref<16x128xf32, #tpu.memory_space<vmem>>, vector<16x128xf32>
    tpu.vector_store %arg2[%c0_2, %c0_3], %6 {strides = array<i32>} : memref<16x128xf32, #tpu.memory_space<vmem>>, vector<16x128xf32>,
    return
  }
  func.func @transform_0(%arg0: i32) -> (i32, i32) {
    %c0_i32 = arith.constant 0 : i32
    %c0_i32_0 = arith.constant 0 : i32
    return %arg0, %c0_i32 : i32, i32
  }
  func.func @transform_1(%arg0: i32) -> (i32, i32) {
    %c0_i32 = arith.constant 0 : i32
    %c0_i32_0 = arith.constant 0 : i32
    return %arg0, %c0_i32 : i32, i32
  }
}

</mosaic_0001>

<llo_original>
// kernel: tpu_custom_call.1
$region0: #{tpu_custom_call.1}
  #allocation0 [shape = 'u32[]', space=smem, size = 0x4, offset = 0x4, fixed_abs, tag = 'smem constant byte address 0x4 - core index']
  #allocation1 [shape = 'u32[144,128]{1,0:T(1,128)}', space=vmem, size = 0x12000, scoped, tag = 'internal scratch']
  %s0 = inlined_call_operand.hbm [shape: f32[16,128], index: 0, kind: input, shape index: {}]
  %s1 = inlined_call_operand.hbm [shape: f32[16,128], index: 1, kind: output, shape index: {}]
  %s2 = sld [smem:[#allocation0]]
  $region18: #{tpu_custom_call.1} parent=0
    _
  %s4 = ssub.s32 1, %s2
  %s5 = scalar_select 0, %s4, %s2
  $region1: #{tpu_custom_call.1} parent=0
    #allocation2 [shape = 'u8[8192]{0}', space=vmem, size = 0x2000, scoped, tag = 'input window, operand 0, single buffered']
    #allocation3 [shape = 's32[1]{0}', space=sflag, size = 0x4, scoped, tag = 'scoped memory for tpu_custom_call.1']
    #allocation4 [shape = 's32[1]{0}', space=sflag, size = 0x4, scoped, tag = 'scoped memory for tpu_custom_call.1']
    #allocation5 [shape = 'u8[8192]{0}', space=vmem, size = 0x2000, scoped, tag = 'output window, operand 0, single buffered']
    %6 = vsyncpa [#allocation3], 0
    %7 = vsyncpa [#allocation4], 0
    // Predicated region
    $region2: #{tpu_custom_call.1} parent=1 // pred_check
      _
    $region3: #{tpu_custom_call.1} parent=1 // pred_check_branch
      %9 = sbr.rel (0) target = $region5
    $region4: #{tpu_custom_call.1} parent=1 // pred_region
      %s11 = ssub.s32 256, 256
      %12 = vsyncadd [#allocation3], %s11
      %s13 = sshll.u32 [#allocation2], 4
      %s14 = int_to_ptr.vmem [resolvable:$true] %s13
      %19 = dma.hbm_to_vmem [thread:$0]  %s0, 256, %s14, [#allocation3], 128, 128, 8
    $region5: #{tpu_custom_call.1} parent=1 // pred_fallthru
      _
    // Predicated region
    $region6: #{tpu_custom_call.1} parent=1 // pred_check
      _
    $region7: #{tpu_custom_call.1} parent=1 // pred_check_branch
      %21 = sbr.rel (0) target = $region9
    $region8: #{tpu_custom_call.1} parent=1 // pred_region
      %22 = dma.done [#allocation3], 256
    $region9: #{tpu_custom_call.1} parent=1 // pred_fallthru
      _
    %v23 = vld [vmem:[#allocation2] sm:$0xff]
    %v24 = vld [vmem:[#allocation2 + $0x8] sm:$0xff]
    %v25 = vmul.f32 %v23, 0.5
    %v26 = vmul.f32 %v24, 0.5
    %v27 = vtanh.pop %v25
    %v28 = vtanh.pop %v26
    %v29 = vadd.f32 %v27, 1.0
    %v30 = vadd.f32 %v28, 1.0
    %v31 = vmul.f32 %v25, %v29
    %v32 = vmul.f32 %v26, %v30
    %33 = vst [vmem:[#allocation5] sm:$0xff] %v31
    %34 = vst [vmem:[#allocation5 + $0x8] sm:$0xff] %v32
    // Predicated region
    $region10: #{tpu_custom_call.1} parent=1 // pred_check
      _
    $region11: #{tpu_custom_call.1} parent=1 // pred_check_branch
      %36 = sbr.rel (0) target = $region13
    $region12: #{tpu_custom_call.1} parent=1 // pred_region
      %s38 = ssub.s32 256, 256
      %39 = vsyncadd [#allocation4], %s38
      %s40 = sshll.u32 [#allocation5], 4
      %s41 = int_to_ptr.vmem [resolvable:$true] %s40
      %46 = dma.vmem_to_hbm [thread:$0]  %s41, 256, %s1, [#allocation4], 128, 128, 8
    $region13: #{tpu_custom_call.1} parent=1 // pred_fallthru
      _
    // Predicated region
    $region14: #{tpu_custom_call.1} parent=1 // pred_check
      _
    $region15: #{tpu_custom_call.1} parent=1 // pred_check_branch
      %48 = sbr.rel (0) target = $region17
    $region16: #{tpu_custom_call.1} parent=1 // pred_region
      %49 = dma.done [#allocation4], 256
    $region17: #{tpu_custom_call.1} parent=1 // pred_fallthru
      _
    %50 = vsyncpa [#allocation3], 1
    %51 = vsyncpa [#allocation4], 1

</llo_original>
